<compile_context>
chip_gen: v6e
topology: v6e:2x2x1
jax: 0.10.0
libtpu: 0.0.40
codegen_flags: <defaults>
</compile_context>

<pallas_src>
import jax
import jax.numpy as jnp
from jax import lax
from jax.experimental import pallas as pl
from jax.experimental.pallas import tpu as pltpu

NUM_CLASSES = 10


def _sgn(x):
    """Exact signum via VPU compare/select (replaces tanh(1e5*x))."""
    return jnp.where(x > 0.0, 1.0, jnp.where(x < 0.0, -1.0, 0.0)).astype(jnp.float32)


def _myact(x):
    # Signum approximation used by the PyTorch reference: tanh(x * 100000).
    return jnp.tanh(x * 100000.0)


def _pick_tile(dim, unit, cap):
    """Largest tile <= cap that divides dim and is a multiple of `unit`;
    falls back to the full dimension (allowed by the (8,128) rule)."""
    if dim <= cap:
        return dim
    t = (cap // unit) * unit
    while t >= unit:
        if dim % t == 0:
            return t
        t -= unit
    return dim


def visual_imitation1(z, size=128, num_classes=NUM_CLASSES):
    """z: f32 [N, 3] = (x, y, class).  Returns f32 [size, size, num_classes]."""
    z = jnp.asarray(z, jnp.float32)
    N = int(z.shape[0])
    S = int(size)
    C = int(num_classes)
    Sf = float(S)

    # ---- wrapper-side class grouping (per-class offsets via scalar prefetch)
    labels_raw = z[:, 2].astype(jnp.int32)
    valid = (labels_raw >= 0) & (labels_raw < C)
    labels = jnp.where(valid, labels_raw, 0)
    # Invalid labels contribute nothing in the reference (one_hot drops them):
    # push their coordinates out of range so their mask is identically zero.
    xs = jnp.where(valid, z[:, 0], -1.0).astype(jnp.float32)
    ys = jnp.where(valid, z[:, 1], -1.0).astype(jnp.float32)

    order = jnp.argsort(labels)                       # group points by class
    xs = xs[order]
    ys = ys[order]
    counts = jnp.bincount(labels, length=C)
    offs = jnp.concatenate(
        [jnp.zeros((1,), counts.dtype), jnp.cumsum(counts)]).astype(jnp.int32)

    # ---- spatial tiling -----------------------------------------------------
    TR = _pick_tile(S, 8, 64)      # sublane (row) tile
    TC = _pick_tile(S, 128, 256)   # lane (col) tile

    def kernel(offs_ref, xs_ref, ys_ref, out_ref):
        c = pl.program_id(2)
        i0 = pl.program_id(0) * TR
        j0 = pl.program_id(1) * TC

        rowi = lax.broadcasted_iota(jnp.int32, (TR, 1), 0) + i0   # global rows
        coli = lax.broadcasted_iota(jnp.int32, (1, TC), 1) + j0   # global cols
        rowf = rowi.astype(jnp.float32)
        colf = coli.astype(jnp.float32)

        # Zero-padding validity of the 4 cross-conv neighbours (row/col only).
        rvm = (rowi >= 1).astype(jnp.float32)
        rvp = (rowi <= S - 2).astype(jnp.float32)
        cvm = (coli >= 1).astype(jnp.float32)
        cvp = (coli <= S - 2).astype(jnp.float32)
        # conv-3 when all sign products are +1 (away from the cross).
        base = 0.5 * ((rvm + rvp) + (cvm + cvp)) - 3.0            # (TR, TC)

        def one_point(p, acc):
            a = xs_ref[p] * Sf
            b = ys_ref[p] * Sf

            # mask(i,j) = (1 - u(i)*v(j))/2 with
            #   u(i) = sgn(a-i)*sgn(a-i-1),  v(j) = sgn(b-j)*sgn(b-j-1)
            da = a - rowf                                    # (TR, 1)
            s0 = _sgn(da + 1.0)
            s1 = _sgn(da)
            s2 = _sgn(da - 1.0)
            s3 = _sgn(da - 2.0)
            u0 = s1 * s2                                     # u(i)
            un = 0.5 * (rvm * (s0 * s1) + rvp * (s2 * s3))   # 0.5*(u(i-1)+u(i+1))

            db = b - colf                                    # (1, TC)
            t0 = _sgn(db + 1.0)
            t1 = _sgn(db)
            t2 = _sgn(db - 1.0)
            t3 = _sgn(db - 2.0)
            v0 = t1 * t2                                     # v(j)
            vn = 0.5 * (cvm * (t0 * t1) + cvp * (t2 * t3))   # 0.5*(v(j-1)+v(j+1))

            # conv2d(mask, cross, pad=1) - 3 == base - (un*v0 + u0*vn).
            # Fuse the two rank-1 outer products into one small bf16 MXU
            # matmul; operands are in {0, +-0.5, +-1} so bf16 is exact.
            lhs = jnp.concatenate([un, u0], axis=1).astype(jnp.bfloat16)   # (TR, 2)
            rhs = jnp.concatenate([v0, vn], axis=0).astype(jnp.bfloat16)   # (2, TC)
            cross = jnp.dot(lhs, rhs, preferred_element_type=jnp.float32)  # (TR, TC)

            # relu(conv-3) folded into the running max (acc >= 0 always).
            return jnp.maximum(acc, base - cross)

        start = offs_ref[c]
        stop = offs_ref[c + 1]
        acc = lax.fori_loop(start, stop, one_point,
                            jnp.zeros((TR, TC), jnp.float32))
        out_ref[0] = acc

    block_bytes = TR * TC * 4
    vmem_limit = int(min(32 * 1024 * 1024,
                         max(16 * 1024 * 1024, 8 * block_bytes)))

    cost = pl.CostEstimate(
        flops=int(N) * S * S * 8,
        transcendentals=0,
        bytes_accessed=C * S * S * 4 + 2 * N * 4 + (C + 1) * 4,
    )

    out_css = pl.pallas_call(
        kernel,
        out_shape=jax.ShapeDtypeStruct((C, S, S), jnp.float32),
        grid_spec=pltpu.PrefetchScalarGridSpec(
            num_scalar_prefetch=1,                       # per-class offsets
            grid=(S // TR, S // TC, C),
            in_specs=[
                pl.BlockSpec(memory_space=pltpu.MemorySpace.SMEM),  # xs (sorted)
                pl.BlockSpec(memory_space=pltpu.MemorySpace.SMEM),  # ys (sorted)
            ],
            out_specs=pl.BlockSpec((1, TR, TC), lambda i, j, c, offs: (c, i, j)),
        ),
        compiler_params=pltpu.CompilerParams(
            dimension_semantics=("parallel", "parallel", "parallel"),
            vmem_limit_bytes=vmem_limit,
        ),
        cost_estimate=cost,
    )(offs, xs, ys)

    # [C, S, S] -> [S, S, C] to match torch.max(I_hat_single, dim=0) layout.
    # Kept outside the kernel: a [TR, TC, 10] out block would force masked
    # lane-partial stores.  Drop this transpose if class-major is acceptable.
    return jnp.transpose(out_css, (1, 2, 0))


def _reference(z, size, num_classes=NUM_CLASSES):
    """Pure-JAX reference mirroring the PyTorch forward (tanh signum)."""
    S = size
    z = jnp.asarray(z, jnp.float32)
    a = z[:, 0][:, None, None] * S
    b = z[:, 1][:, None, None] * S

    def mask_mat(gx, gy):
        x_new = _myact(a - gx[None, None, :])
        y_new = _myact(b - gy[None, :, None])
        return _myact(x_new * y_new)

    gx1 = jnp.arange(0, S, dtype=jnp.float32)
    gy1 = jnp.arange(1, S + 1, dtype=jnp.float32)
    gx3 = jnp.arange(1, S + 1, dtype=jnp.float32)
    gy3 = jnp.arange(0, S, dtype=jnp.float32)

    mask = mask_mat(gx1, gy1) * mask_mat(gx3, gy3)
    mask = (mask - 1.0) / 2.0 * -1.0
    mask = jnp.transpose(mask, (0, 2, 1))

    padded = jnp.pad(mask, ((0, 0), (1, 1), (1, 1)))
    conv = (padded[:, :-2, 1:-1] + padded[:, 2:, 1:-1]
            + padded[:, 1:-1, :-2] + padded[:, 1:-1, 2:])
    masks = jnp.maximum(conv - 3.0, 0.0)

    labels = jax.nn.one_hot(z[:, 2].astype(jnp.int32), num_classes,
                            dtype=jnp.float32)
    I_hat_single = masks[..., None] * labels[:, None, None, :]
    return jnp.max(I_hat_single, axis=0)


if __name__ == "__main__":
    S = 128
    N = 8
    key = jax.random.PRNGKey(0)
    kxy, kc = jax.random.split(key)
    xy = jax.random.uniform(kxy, (N, 2), dtype=jnp.float32)           # coords in [0,1)
    cls = jax.random.randint(kc, (N, 1), 0, NUM_CLASSES).astype(jnp.float32)
    z = jnp.concatenate([xy, cls], axis=1)                             # [N, 3]

    out = visual_imitation1(z, size=S)
    out = jax.block_until_ready(out)
    assert out.shape == (S, S, NUM_CLASSES), out.shape

    ref = jax.block_until_ready(_reference(z, size=S))
    assert jnp.allclose(out, ref, atol=1e-5), float(jnp.max(jnp.abs(out - ref)))

    print("KERNEL_OK")
</pallas_src>

<mosaic_0001>
module attributes {stable_mosaic.version = 11 : i64} {
  func.func @kernel(%arg0: i32, %arg1: i32, %arg2: i32, %arg3: memref<11xi32, #tpu.memory_space<smem>>, %arg4: memref<8xf32, #tpu.memory_space<smem>>, %arg5: memref<8xf32, #tpu.memory_space<smem>>, %arg6: memref<1x64x128xf32, #tpu.memory_space<vmem>>) attributes {dimension_semantics = [#tpu.dimension_semantics<parallel>, #tpu.dimension_semantics<parallel>, #tpu.dimension_semantics<parallel>], iteration_bounds = array<i64: 2, 1, 10>, scalar_prefetch = 1 : i64, scratch_operands = 0 : i64, tpu.core_type = #tpu.core_type<tc>, window_params = [{transform_indices = @transform_0, window_bounds = array<i64: 8>}, {transform_indices = @transform_1, window_bounds = array<i64: 8>}, {transform_indices = @transform_2, window_bounds = array<i64: 1, 64, 128>}]} {
    %c64_i32 = arith.constant 64 : i32
    %0 = arith.muli %arg0, %c64_i32 : i32
    %c128_i32 = arith.constant 128 : i32
    %1 = arith.muli %arg1, %c128_i32 : i32
    %2 = tpu.iota {dimensions = array<i32: 0>} : vector<64x1xi32>
    %3 = vector.broadcast %0 : i32 to vector<64x1xi32>
    %4 = arith.addi %2, %3 : vector<64x1xi32>
    %5 = tpu.iota {dimensions = array<i32: 1>} : vector<1x128xi32>
    %6 = vector.broadcast %1 : i32 to vector<1x128xi32>
    %7 = arith.addi %5, %6 : vector<1x128xi32>
    %8 = arith.sitofp %4 : vector<64x1xi32> to vector<64x1xf32>
    %9 = arith.sitofp %7 : vector<1x128xi32> to vector<1x128xf32>
    %c1_i32 = arith.constant 1 : i32
    %10 = vector.broadcast %c1_i32 : i32 to vector<64x1xi32>
    %11 = arith.cmpi sge, %4, %10 : vector<64x1xi32>
    %12 = arith.extui %11 : vector<64x1xi1> to vector<64x1xi32>
    %13 = arith.sitofp %12 : vector<64x1xi32> to vector<64x1xf32>
    %c126_i32 = arith.constant 126 : i32
    %14 = vector.broadcast %c126_i32 : i32 to vector<64x1xi32>
    %15 = arith.cmpi sle, %4, %14 : vector<64x1xi32>
    %16 = arith.extui %15 : vector<64x1xi1> to vector<64x1xi32>
    %17 = arith.sitofp %16 : vector<64x1xi32> to vector<64x1xf32>
    %c1_i32_0 = arith.constant 1 : i32
    %18 = vector.broadcast %c1_i32_0 : i32 to vector<1x128xi32>
    %19 = arith.cmpi sge, %7, %18 : vector<1x128xi32>
    %20 = arith.extui %19 : vector<1x128xi1> to vector<1x128xi32>
    %21 = arith.sitofp %20 : vector<1x128xi32> to vector<1x128xf32>
    %c126_i32_1 = arith.constant 126 : i32
    %22 = vector.broadcast %c126_i32_1 : i32 to vector<1x128xi32>
    %23 = arith.cmpi sle, %7, %22 : vector<1x128xi32>
    %24 = arith.extui %23 : vector<1x128xi1> to vector<1x128xi32>
    %25 = arith.sitofp %24 : vector<1x128xi32> to vector<1x128xf32>
    %26 = arith.addf %13, %17 : vector<64x1xf32>
    %27 = arith.addf %21, %25 : vector<1x128xf32>
    %28 = vector.broadcast %26 : vector<64x1xf32> to vector<64x128xf32>
    %29 = vector.broadcast %27 : vector<1x128xf32> to vector<64x128xf32>
    %30 = arith.addf %28, %29 : vector<64x128xf32>
    %cst = arith.constant 5.000000e-01 : f32
    %31 = vector.broadcast %cst : f32 to vector<64x128xf32>
    %32 = arith.mulf %31, %30 : vector<64x128xf32>
    %cst_2 = arith.constant 3.000000e+00 : f32
    %33 = vector.broadcast %cst_2 : f32 to vector<64x128xf32>
    %34 = arith.subf %32, %33 : vector<64x128xf32>
    %35 = arith.index_cast %arg2 : i32 to index
    %36 = memref.load %arg3[%35] : memref<11xi32, #tpu.memory_space<smem>>
    %c1_i32_3 = arith.constant 1 : i32
    %37 = arith.addi %arg2, %c1_i32_3 : i32
    %38 = arith.index_cast %37 : i32 to index
    %39 = memref.load %arg3[%38] : memref<11xi32, #tpu.memory_space<smem>>
    %cst_4 = arith.constant 0.000000e+00 : f32
    %40 = vector.broadcast %cst_4 : f32 to vector<64x128xf32>
    %41 = arith.subi %39, %36 : i32
    %42 = arith.addi %36, %41 : i32
    %c1_i32_5 = arith.constant 1 : i32
    %43 = scf.for %arg7 = %36 to %42 step %c1_i32_5 iter_args(%arg8 = %40) -> (vector<64x128xf32>)  : i32 {
      %47 = arith.index_cast %arg7 : i32 to index
      %48 = memref.load %arg4[%47] : memref<8xf32, #tpu.memory_space<smem>>
      %cst_8 = arith.constant 1.280000e+02 : f32
      %49 = arith.mulf %48, %cst_8 : f32
      %50 = arith.index_cast %arg7 : i32 to index
      %51 = memref.load %arg5[%50] : memref<8xf32, #tpu.memory_space<smem>>
      %cst_9 = arith.constant 1.280000e+02 : f32
      %52 = arith.mulf %51, %cst_9 : f32
      %53 = vector.broadcast %49 : f32 to vector<64x1xf32>
      %54 = arith.subf %53, %8 : vector<64x1xf32>
      %cst_10 = arith.constant 1.000000e+00 : f32
      %55 = vector.broadcast %cst_10 : f32 to vector<64x1xf32>
      %56 = arith.addf %54, %55 : vector<64x1xf32>
      %cst_11 = arith.constant 0.000000e+00 : f32
      %57 = vector.broadcast %cst_11 : f32 to vector<64x1xf32>
      %58 = arith.cmpf ogt, %56, %57 : vector<64x1xf32>
      %cst_12 = arith.constant 0.000000e+00 : f32
      %59 = vector.broadcast %cst_12 : f32 to vector<64x1xf32>
      %60 = arith.cmpf olt, %56, %59 : vector<64x1xf32>
      %cst_13 = arith.constant -1.000000e+00 : f32
      %cst_14 = arith.constant 0.000000e+00 : f32
      %61 = vector.broadcast %cst_13 : f32 to vector<64x1xf32>
      %62 = vector.broadcast %cst_14 : f32 to vector<64x1xf32>
      %63 = arith.select %60, %61, %62 : vector<64x1xi1>, vector<64x1xf32>
      %cst_15 = arith.constant 1.000000e+00 : f32
      %64 = vector.broadcast %cst_15 : f32 to vector<64x1xf32>
      %65 = arith.select %58, %64, %63 : vector<64x1xi1>, vector<64x1xf32>
      %cst_16 = arith.constant 0.000000e+00 : f32
      %66 = vector.broadcast %cst_16 : f32 to vector<64x1xf32>
      %67 = arith.cmpf ogt, %54, %66 : vector<64x1xf32>
      %cst_17 = arith.constant 0.000000e+00 : f32
      %68 = vector.broadcast %cst_17 : f32 to vector<64x1xf32>
      %69 = arith.cmpf olt, %54, %68 : vector<64x1xf32>
      %cst_18 = arith.constant -1.000000e+00 : f32
      %cst_19 = arith.constant 0.000000e+00 : f32
      %70 = vector.broadcast %cst_18 : f32 to vector<64x1xf32>
      %71 = vector.broadcast %cst_19 : f32 to vector<64x1xf32>
      %72 = arith.select %69, %70, %71 : vector<64x1xi1>, vector<64x1xf32>
      %cst_20 = arith.constant 1.000000e+00 : f32
      %73 = vector.broadcast %cst_20 : f32 to vector<64x1xf32>
      %74 = arith.select %67, %73, %72 : vector<64x1xi1>, vector<64x1xf32>
      %cst_21 = arith.constant 1.000000e+00 : f32
      %75 = vector.broadcast %cst_21 : f32 to vector<64x1xf32>
      %76 = arith.subf %54, %75 : vector<64x1xf32>
      %cst_22 = arith.constant 0.000000e+00 : f32
      %77 = vector.broadcast %cst_22 : f32 to vector<64x1xf32>
      %78 = arith.cmpf ogt, %76, %77 : vector<64x1xf32>
      %cst_23 = arith.constant 0.000000e+00 : f32
      %79 = vector.broadcast %cst_23 : f32 to vector<64x1xf32>
      %80 = arith.cmpf olt, %76, %79 : vector<64x1xf32>
      %cst_24 = arith.constant -1.000000e+00 : f32
      %cst_25 = arith.constant 0.000000e+00 : f32
      %81 = vector.broadcast %cst_24 : f32 to vector<64x1xf32>
      %82 = vector.broadcast %cst_25 : f32 to vector<64x1xf32>
      %83 = arith.select %80, %81, %82 : vector<64x1xi1>, vector<64x1xf32>
      %cst_26 = arith.constant 1.000000e+00 : f32
      %84 = vector.broadcast %cst_26 : f32 to vector<64x1xf32>
      %85 = arith.select %78, %84, %83 : vector<64x1xi1>, vector<64x1xf32>
      %cst_27 = arith.constant 2.000000e+00 : f32
      %86 = vector.broadcast %cst_27 : f32 to vector<64x1xf32>
      %87 = arith.subf %54, %86 : vector<64x1xf32>
      %cst_28 = arith.constant 0.000000e+00 : f32
      %88 = vector.broadcast %cst_28 : f32 to vector<64x1xf32>
      %89 = arith.cmpf ogt, %87, %88 : vector<64x1xf32>
      %cst_29 = arith.constant 0.000000e+00 : f32
      %90 = vector.broadcast %cst_29 : f32 to vector<64x1xf32>
      %91 = arith.cmpf olt, %87, %90 : vector<64x1xf32>
      %cst_30 = arith.constant -1.000000e+00 : f32
      %cst_31 = arith.constant 0.000000e+00 : f32
      %92 = vector.broadcast %cst_30 : f32 to vector<64x1xf32>
      %93 = vector.broadcast %cst_31 : f32 to vector<64x1xf32>
      %94 = arith.select %91, %92, %93 : vector<64x1xi1>, vector<64x1xf32>
      %cst_32 = arith.constant 1.000000e+00 : f32
      %95 = vector.broadcast %cst_32 : f32 to vector<64x1xf32>
      %96 = arith.select %89, %95, %94 : vector<64x1xi1>, vector<64x1xf32>
      %97 = arith.mulf %74, %85 : vector<64x1xf32>
      %98 = arith.mulf %65, %74 : vector<64x1xf32>
      %99 = arith.mulf %13, %98 : vector<64x1xf32>
      %100 = arith.mulf %85, %96 : vector<64x1xf32>
      %101 = arith.mulf %17, %100 : vector<64x1xf32>
      %102 = arith.addf %99, %101 : vector<64x1xf32>
      %cst_33 = arith.constant 5.000000e-01 : f32
      %103 = vector.broadcast %cst_33 : f32 to vector<64x1xf32>
      %104 = arith.mulf %103, %102 : vector<64x1xf32>
      %105 = vector.broadcast %52 : f32 to vector<1x128xf32>
      %106 = arith.subf %105, %9 : vector<1x128xf32>
      %cst_34 = arith.constant 1.000000e+00 : f32
      %107 = vector.broadcast %cst_34 : f32 to vector<1x128xf32>
      %108 = arith.addf %106, %107 : vector<1x128xf32>
      %cst_35 = arith.constant 0.000000e+00 : f32
      %109 = vector.broadcast %cst_35 : f32 to vector<1x128xf32>
      %110 = arith.cmpf ogt, %108, %109 : vector<1x128xf32>
      %cst_36 = arith.constant 0.000000e+00 : f32
      %111 = vector.broadcast %cst_36 : f32 to vector<1x128xf32>
      %112 = arith.cmpf olt, %108, %111 : vector<1x128xf32>
      %cst_37 = arith.constant -1.000000e+00 : f32
      %cst_38 = arith.constant 0.000000e+00 : f32
      %113 = vector.broadcast %cst_37 : f32 to vector<1x128xf32>
      %114 = vector.broadcast %cst_38 : f32 to vector<1x128xf32>
      %115 = arith.select %112, %113, %114 : vector<1x128xi1>, vector<1x128xf32>
      %cst_39 = arith.constant 1.000000e+00 : f32
      %116 = vector.broadcast %cst_39 : f32 to vector<1x128xf32>
      %117 = arith.select %110, %116, %115 : vector<1x128xi1>, vector<1x128xf32>
      %cst_40 = arith.constant 0.000000e+00 : f32
      %118 = vector.broadcast %cst_40 : f32 to vector<1x128xf32>
      %119 = arith.cmpf ogt, %106, %118 : vector<1x128xf32>
      %cst_41 = arith.constant 0.000000e+00 : f32
      %120 = vector.broadcast %cst_41 : f32 to vector<1x128xf32>
      %121 = arith.cmpf olt, %106, %120 : vector<1x128xf32>
      %cst_42 = arith.constant -1.000000e+00 : f32
      %cst_43 = arith.constant 0.000000e+00 : f32
      %122 = vector.broadcast %cst_42 : f32 to vector<1x128xf32>
      %123 = vector.broadcast %cst_43 : f32 to vector<1x128xf32>
      %124 = arith.select %121, %122, %123 : vector<1x128xi1>, vector<1x128xf32>
      %cst_44 = arith.constant 1.000000e+00 : f32
      %125 = vector.broadcast %cst_44 : f32 to vector<1x128xf32>
      %126 = arith.select %119, %125, %124 : vector<1x128xi1>, vector<1x128xf32>
      %cst_45 = arith.constant 1.000000e+00 : f32
      %127 = vector.broadcast %cst_45 : f32 to vector<1x128xf32>
      %128 = arith.subf %106, %127 : vector<1x128xf32>
      %cst_46 = arith.constant 0.000000e+00 : f32
      %129 = vector.broadcast %cst_46 : f32 to vector<1x128xf32>
      %130 = arith.cmpf ogt, %128, %129 : vector<1x128xf32>
      %cst_47 = arith.constant 0.000000e+00 : f32
      %131 = vector.broadcast %cst_47 : f32 to vector<1x128xf32>
      %132 = arith.cmpf olt, %128, %131 : vector<1x128xf32>
      %cst_48 = arith.constant -1.000000e+00 : f32
      %cst_49 = arith.constant 0.000000e+00 : f32
      %133 = vector.broadcast %cst_48 : f32 to vector<1x128xf32>
      %134 = vector.broadcast %cst_49 : f32 to vector<1x128xf32>
      %135 = arith.select %132, %133, %134 : vector<1x128xi1>, vector<1x128xf32>
      %cst_50 = arith.constant 1.000000e+00 : f32
      %136 = vector.broadcast %cst_50 : f32 to vector<1x128xf32>
      %137 = arith.select %130, %136, %135 : vector<1x128xi1>, vector<1x128xf32>
      %cst_51 = arith.constant 2.000000e+00 : f32
      %138 = vector.broadcast %cst_51 : f32 to vector<1x128xf32>
      %139 = arith.subf %106, %138 : vector<1x128xf32>
      %cst_52 = arith.constant 0.000000e+00 : f32
      %140 = vector.broadcast %cst_52 : f32 to vector<1x128xf32>
      %141 = arith.cmpf ogt, %139, %140 : vector<1x128xf32>
      %cst_53 = arith.constant 0.000000e+00 : f32
      %142 = vector.broadcast %cst_53 : f32 to vector<1x128xf32>
      %143 = arith.cmpf olt, %139, %142 : vector<1x128xf32>
      %cst_54 = arith.constant -1.000000e+00 : f32
      %cst_55 = arith.constant 0.000000e+00 : f32
      %144 = vector.broadcast %cst_54 : f32 to vector<1x128xf32>
      %145 = vector.broadcast %cst_55 : f32 to vector<1x128xf32>
      %146 = arith.select %143, %144, %145 : vector<1x128xi1>, vector<1x128xf32>
      %cst_56 = arith.constant 1.000000e+00 : f32
      %147 = vector.broadcast %cst_56 : f32 to vector<1x128xf32>
      %148 = arith.select %141, %147, %146 : vector<1x128xi1>, vector<1x128xf32>
      %149 = arith.mulf %126, %137 : vector<1x128xf32>
      %150 = arith.mulf %117, %126 : vector<1x128xf32>
      %151 = arith.mulf %21, %150 : vector<1x128xf32>
      %152 = arith.mulf %137, %148 : vector<1x128xf32>
      %153 = arith.mulf %25, %152 : vector<1x128xf32>
      %154 = arith.addf %151, %153 : vector<1x128xf32>
      %cst_57 = arith.constant 5.000000e-01 : f32
      %155 = vector.broadcast %cst_57 : f32 to vector<1x128xf32>
      %156 = arith.mulf %155, %154 : vector<1x128xf32>
      %157 = tpu.concatenate %104, %97 in 1 : vector<64x1xf32>, vector<64x1xf32> -> vector<64x2xf32>
      %158 = arith.truncf %157 : vector<64x2xf32> to vector<64x2xbf16>
      %159 = tpu.concatenate %149, %156 in 0 : vector<1x128xf32>, vector<1x128xf32> -> vector<2x128xf32>
      %160 = arith.truncf %159 : vector<2x128xf32> to vector<2x128xbf16>
      %cst_58 = arith.constant dense<0.000000e+00> : vector<64x128xf32>
      %161 = tpu.matmul %158, %160, %cst_58 {dimension_numbers = #tpu.dot_dimension_numbers<[1], [0], [0], [1], [0, 0, 1, 1], [], []>} : vector<64x2xbf16>, vector<2x128xbf16>, vector<64x128xf32> -> vector<64x128xf32>
      %162 = arith.subf %34, %161 : vector<64x128xf32>
      %163 = arith.maximumf %arg8, %162 : vector<64x128xf32>
      scf.yield %163 : vector<64x128xf32>
    }
    %c0 = arith.constant 0 : index
    %c0_6 = arith.constant 0 : index
    %c0_7 = arith.constant 0 : index
    %44 = vector.load %arg6[%c0, %c0_6, %c0_7] : memref<1x64x128xf32, #tpu.memory_space<vmem>>, vector<1x64x128xf32>
    %45 = vector.shape_cast %44 : vector<1x64x128xf32> to vector<64x128xf32>
    %46 = vector.shape_cast %43 : vector<64x128xf32> to vector<1x64x128xf32>
    tpu.vector_store %arg6[%c0, %c0_6, %c0_7], %46 {strides = array<i32>} : memref<1x64x128xf32, #tpu.memory_space<vmem>>, vector<1x64x128xf32>,
    return
  }
  func.func @transform_0(%arg0: i32, %arg1: i32, %arg2: i32, %arg3: memref<11xi32, #tpu.memory_space<smem>>) -> i32 {
    %c0_i32 = arith.constant 0 : i32
    %c0_i32_0 = arith.constant 0 : i32
    return %c0_i32 : i32
  }
  func.func @transform_1(%arg0: i32, %arg1: i32, %arg2: i32, %arg3: memref<11xi32, #tpu.memory_space<smem>>) -> i32 {
    %c0_i32 = arith.constant 0 : i32
    %c0_i32_0 = arith.constant 0 : i32
    return %c0_i32 : i32
  }
  func.func @transform_2(%arg0: i32, %arg1: i32, %arg2: i32, %arg3: memref<11xi32, #tpu.memory_space<smem>>) -> (i32, i32, i32) {
    %c0_i32 = arith.constant 0 : i32
    return %arg2, %arg0, %arg1 : i32, i32, i32
  }
}

</mosaic_0001>

<llo_original>
// kernel: tpu_custom_call.1
$region0: #{tpu_custom_call.1}
  #allocation0 [shape = 'u32[]', space=smem, size = 0x4, offset = 0x4, fixed_abs, tag = 'smem constant byte address 0x4 - core index']
  #allocation1 [shape = 'u32[144,128]{1,0:T(1,128)}', space=vmem, size = 0x12000, scoped, tag = 'internal scratch']
  #allocation2 [shape = 's32[1]{0}', space=sflag, size = 0x4, scoped, tag = 'scoped memory for tpu_custom_call.1']
  #allocation3 [shape = 'u8[512]{0}', space=smem, size = 0x200, scoped, tag = 'prefetched SMEM operand 0']
  %s0 = inlined_call_operand.hbm [shape: s32[11], index: 0, kind: input, shape index: {}]
  %s1 = inlined_call_operand.vmem [shape: f32[8], index: 1, kind: input, shape index: {}]
  %s2 = inlined_call_operand.vmem [shape: f32[8], index: 2, kind: input, shape index: {}]
  %s3 = inlined_call_operand.hbm [shape: f32[10,128,128], index: 3, kind: output, shape index: {}]
  %s4 = sld [smem:[#allocation0]]
  $region56: #{tpu_custom_call.1} parent=0
    _
  %s6 = ssub.s32 1, %s4
  %s7 = scalar_select 0, %s6, %s4
  %9 = dma.hbm_to_smem %s0, 16, [#allocation3], [#allocation2]
  %10 = dma.done [#allocation2], 16
  %11 = sfence
  $region1: #{tpu_custom_call.1} parent=0
    #allocation4 [shape = 'u8[512]{0}', space=smem, size = 0x200, scoped, tag = 'input window, operand 1, single buffered']
    #allocation5 [shape = 's32[2]{0}', space=sflag, size = 0x8, scoped, tag = 'scoped memory for tpu_custom_call.1']
    #allocation6 [shape = 's32[2]{0}', space=sflag, size = 0x8, scoped, tag = 'scoped memory for tpu_custom_call.1']
    #allocation7 [shape = 'u8[512]{0}', space=smem, size = 0x200, scoped, tag = 'input window, operand 2, single buffered']
    #allocation8 [shape = 's32[1]{0}', space=sflag, size = 0x4, scoped, tag = 'scoped memory for tpu_custom_call.1']
    #allocation9 [shape = 'u8[65536]{0}', space=vmem, size = 0x10000, scoped, tag = 'output window, operand 0']
    %12 = vsyncpa [#allocation6], 0
    %13 = vsyncpa [#allocation8], 0
    %14 = vsyncpa [#allocation5], 0
    %s15 = scalar_lea.sflag [#allocation5], 1
    %16 = vsyncpa %s15, 0
    loop: start=0, step=1, limit=22
    $region2: #{tpu_custom_call.1} parent=1 // loop_pre_header
      _
    $region3: #{tpu_custom_call.1} parent=1 // loop_header
      %s18 = sphi 0, %s22
      %p19 = scmp.ge.s32.totalorder %s18, 22
      %s25 = sphi 0, %s44
      %s26 = sphi 0, %s40
      %s27 = sphi 0, %s36
      %s28 = sphi 0, %s25
      %s29 = sphi 0, %s26
      %s30 = sphi 0, %s27
      %s31 = sphi 0, %s28
      %s32 = sphi 0, %s29
      %s33 = sphi 0, %s30
      %s45 = sphi 0, %s45
      %s47 = sphi 0, %s45
      %s48 = sphi 0, %s47
      %s62 = sphi 0, %s48
      %s66 = sphi 0, %s66
      %s68 = sphi 0, %s66
      %s69 = sphi 0, %s68
      %s83 = sphi 0, %s69
      %s93 = sphi 0, %s95
      %s96 = sphi 0, %s93
      %s97 = sphi 0, %s96
      %s113 = sphi 0, %s97
    $region4: #{tpu_custom_call.1} parent=1 // loop_header_branch
      %21 = sbr.rel (%p19) target = $region8
    $region5: #{tpu_custom_call.1} parent=1 // loop_body
      %s23 = ssub.s32 %s18, 1
      %s24 = ssub.s32 %s18, 2
      %s34 = sadd.s32 1, %s27
      %p35 = scmp.ge.s32.totalorder %s34, 10
      %s36 = scalar_select %p35, 0, %s34
      %s37 = sadd.s32 1, %s26
      %s38 = scalar_select %p35, %s37, %s26
      %p39 = scmp.ge.s32.totalorder %s38, 1
      %s40 = scalar_select %p39, 0, %s38
      %s41 = sadd.s32 1, %s25
      %s42 = scalar_select %p39, %s41, %s25
      %p43 = scmp.ge.s32.totalorder %s42, 2
      %s44 = scalar_select %p43, 0, %s42
      %s46 = sadd.s32 %s45, 1
      %p49 = scmp.eq.s32.totalorder %s18, 19
      %p50 = scmp.ne.s32.totalorder %s45, %s47
      %p51 = scmp.eq.s32.totalorder %s18, 0
      %p52 = por %p50, %p51
      %p53 = scmp.ne.s32.totalorder %s45, %s47
      %p54 = scmp.eq.s32.totalorder %s23, 19
      %p55 = por %p53, %p54
      %p56 = scmp.ne.s32.totalorder %s47, %s48
      %p57 = scmp.eq.s32.totalorder %s23, 0
      %p58 = por %p56, %p57
      %p59 = scmp.ne.s32.totalorder %s47, %s48
      %p60 = scmp.eq.s32.totalorder %s24, 19
      %p61 = por %p59, %p60
      %p63 = scmp.ne.s32.totalorder %s48, %s62
      %p64 = scmp.eq.s32.totalorder %s24, 0
      %p65 = por %p63, %p64
      %s67 = sadd.s32 %s66, 1
      %p70 = scmp.eq.s32.totalorder %s18, 19
      %p71 = scmp.ne.s32.totalorder %s66, %s68
      %p72 = scmp.eq.s32.totalorder %s18, 0
      %p73 = por %p71, %p72
      %p74 = scmp.ne.s32.totalorder %s66, %s68
      %p75 = scmp.eq.s32.totalorder %s23, 19
      %p76 = por %p74, %p75
      %p77 = scmp.ne.s32.totalorder %s68, %s69
      %p78 = scmp.eq.s32.totalorder %s23, 0
      %p79 = por %p77, %p78
      %p80 = scmp.ne.s32.totalorder %s68, %s69
      %p81 = scmp.eq.s32.totalorder %s24, 19
      %p82 = por %p80, %p81
      %p84 = scmp.ne.s32.totalorder %s69, %s83
      %p85 = scmp.eq.s32.totalorder %s24, 0
      %p86 = por %p84, %p85
      %s87 = ssub.s32 %s27, %s36
      %s88 = ssub.s32 %s25, %s44
      %s89 = sor.u32 %s87, %s88
      %s90 = ssub.s32 %s26, %s40
      %s91 = sor.u32 %s89, %s90
      %p92 = scmp.eq.s32.totalorder %s91, 0
      %s94 = sadd.s32 %s93, 1
      %s95 = scalar_select %p92, %s93, %s94
      %p98 = pneg %p92
      %p99 = scmp.eq.s32.totalorder %s18, 19
      %p100 = por %p98, %p99
      %p101 = scmp.ne.s32.totalorder %s93, %s96
      %p102 = scmp.eq.s32.totalorder %s18, 0
      %p103 = por %p101, %p102
      %p104 = scmp.ne.s32.totalorder %s93, %s96
      %p105 = scmp.eq.s32.totalorder %s23, 19
      %p106 = por %p104, %p105
      %p107 = scmp.ne.s32.totalorder %s96, %s97
      %p108 = scmp.eq.s32.totalorder %s23, 0
      %p109 = por %p107, %p108
      %p110 = scmp.ne.s32.totalorder %s96, %s97
      %p111 = scmp.eq.s32.totalorder %s24, 19
      %p112 = por %p110, %p111
      %p114 = scmp.ne.s32.totalorder %s97, %s113
      %p115 = scmp.eq.s32.totalorder %s24, 0
      %p116 = por %p114, %p115
      %p117 = scmp.le.s32.totalorder 1, %s18
      %p118 = scmp.lt.s32.totalorder %s18, 21
      %p119 = pnand %p117, %p118
      %p120 = pneg %p119
      // Predicated region
      $region9: #{tpu_custom_call.1} parent=5 // pred_check
        _
      $region10: #{tpu_custom_call.1} parent=5 // pred_check_branch
        %122 = sbr.rel (%p119) target = $region12
      $region11: #{tpu_custom_call.1} parent=5 // pred_region
        %s123 = ssub.s32 %s18, 1
        // Predicated region
        $region13: #{tpu_custom_call.1} parent=11 // pred_check
          %p124 = pneg %p58
        $region14: #{tpu_custom_call.1} parent=11 // pred_check_branch
          %126 = sbr.rel (%p124) target = $region16
        $region15: #{tpu_custom_call.1} parent=11 // pred_region
          %s128 = ssub.s32 16, 16
          %129 = vsyncadd [#allocation6], %s128
          %s131 = sshll.u32 %s1, 4
          %s132 = int_to_ptr.vmem [resolvable:$true] %s131
          %134 = dma.vmem_to_smem %s132, 16, [#allocation4], [#allocation6]
        $region16: #{tpu_custom_call.1} parent=11 // pred_fallthru
          _
        // Predicated region
        $region17: #{tpu_custom_call.1} parent=11 // pred_check
          %p135 = pneg %p79
        $region18: #{tpu_custom_call.1} parent=11 // pred_check_branch
          %137 = sbr.rel (%p135) target = $region20
        $region19: #{tpu_custom_call.1} parent=11 // pred_region
          %s139 = ssub.s32 16, 16
          %140 = vsyncadd [#allocation8], %s139
          %s142 = sshll.u32 %s2, 4
          %s143 = int_to_ptr.vmem [resolvable:$true] %s142
          %145 = dma.vmem_to_smem %s143, 16, [#allocation7], [#allocation8]
        $region20: #{tpu_custom_call.1} parent=11 // pred_fallthru
          _
      $region12: #{tpu_custom_call.1} parent=5 // pred_fallthru
        _
      %p146 = scmp.lt.s32.totalorder %s18, 20
      // Predicated region
      $region21: #{tpu_custom_call.1} parent=5 // pred_check
        %p147 = pneg %p146
      $region22: #{tpu_custom_call.1} parent=5 // pred_check_branch
        %149 = sbr.rel (%p147) target = $region24
      $region23: #{tpu_custom_call.1} parent=5 // pred_region
        _
      $region24: #{tpu_custom_call.1} parent=5 // pred_fallthru
        _
      %p150 = scmp.le.s32.totalorder 1, %s18
      %p151 = scmp.lt.s32.totalorder %s18, 21
      %p152 = pnand %p150, %p151
      %p153 = pneg %p152
      // Predicated region
      $region25: #{tpu_custom_call.1} parent=5 // pred_check
        _
      $region26: #{tpu_custom_call.1} parent=5 // pred_check_branch
        %155 = sbr.rel (%p152) target = $region28
      $region27: #{tpu_custom_call.1} parent=5 // pred_region
        %s156 = ssub.s32 %s18, 1
        // Predicated region
        $region29: #{tpu_custom_call.1} parent=27 // pred_check
          %p157 = pneg %p58
        $region30: #{tpu_custom_call.1} parent=27 // pred_check_branch
          %159 = sbr.rel (%p157) target = $region32
        $region31: #{tpu_custom_call.1} parent=27 // pred_region
          %160 = dma.done [#allocation6], 16
        $region32: #{tpu_custom_call.1} parent=27 // pred_fallthru
          _
        // Predicated region
        $region33: #{tpu_custom_call.1} parent=27 // pred_check
          %p161 = pneg %p79
        $region34: #{tpu_custom_call.1} parent=27 // pred_check_branch
          %163 = sbr.rel (%p161) target = $region36
        $region35: #{tpu_custom_call.1} parent=27 // pred_region
          %164 = dma.done [#allocation8], 16
        $region36: #{tpu_custom_call.1} parent=27 // pred_fallthru
          _
        %165 = sfence
        %p166 = pneg %p58
        %p167 = pneg %p55
        %p168 = pneg %p79
        %p169 = pneg %p76
        %p170 = pneg %p109
        %p171 = pneg %p106
        %s172 = sand.u32 %s96, 1
        %s173 = scalar_lea.sflag [#allocation5], %s172
        %s174 = sand.u32 %s96, 1
        %s175 = smul.addr %s174, 64
        %s176 = scalar_lea.vmem [#allocation9], %s175
        %s177 = smul.u32 8, %s28
        %s179 = smul.u32 %s28, 64
        %s180 = smul.u32 %s29, 128
        %v181 = vlaneseq
        %v182 = vshrl.u32 %v181, 7
        %v183 = vadd.s32 %v182, 8
        %v184 = vadd.s32 %v182, 16
        %v185 = vadd.s32 %v182, 24
        %v186 = vadd.s32 %v182, 32
        %v187 = vadd.s32 %v182, 40
        %v188 = vadd.s32 %v182, 48
        %v189 = vadd.s32 %v182, 56
        %v190 = vstv %s179
        %v191 = vadd.s32 %v182, %v190
        %v192 = vadd.s32 %v183, %v190
        %v193 = vadd.s32 %v184, %v190
        %v194 = vadd.s32 %v185, %v190
        %v195 = vadd.s32 %v186, %v190
        %v196 = vadd.s32 %v187, %v190
        %v197 = vadd.s32 %v188, %v190
        %v198 = vadd.s32 %v189, %v190
        %v199 = vlaneseq
        %v200 = vand.u32 %v199, 127
        %v201 = vstv %s180
        %v202 = vadd.s32 %v200, %v201
        %v203 = vcvt.s32.f32 %v191
        %v204 = vcvt.s32.f32 %v192
        %v205 = vcvt.s32.f32 %v193
        %v206 = vcvt.s32.f32 %v194
        %v207 = vcvt.s32.f32 %v195
        %v208 = vcvt.s32.f32 %v196
        %v209 = vcvt.s32.f32 %v197
        %v210 = vcvt.s32.f32 %v198
        %v211 = vcvt.s32.f32 %v202
        %vm212 = vcmp.ge.s32.totalorder %v191, 1
        %vm213 = vcmp.ge.s32.totalorder %v192, 1
        %vm214 = vcmp.ge.s32.totalorder %v193, 1
        %vm215 = vcmp.ge.s32.totalorder %v194, 1
        %vm216 = vcmp.ge.s32.totalorder %v195, 1
        %vm217 = vcmp.ge.s32.totalorder %v196, 1
        %vm218 = vcmp.ge.s32.totalorder %v197, 1
        %vm219 = vcmp.ge.s32.totalorder %v198, 1
        %v220 = vsel %vm212, 1, 0
        %v221 = vsel %vm213, 1, 0
        %v222 = vsel %vm214, 1, 0
        %v223 = vsel %vm215, 1, 0
        %v224 = vsel %vm216, 1, 0
        %v225 = vsel %vm217, 1, 0
        %v226 = vsel %vm218, 1, 0
        %v227 = vsel %vm219, 1, 0
        %v228 = vcvt.s32.f32 %v220
        %v229 = vcvt.s32.f32 %v221
        %v230 = vcvt.s32.f32 %v222
        %v231 = vcvt.s32.f32 %v223
        %v232 = vcvt.s32.f32 %v224
        %v233 = vcvt.s32.f32 %v225
        %v234 = vcvt.s32.f32 %v226
        %v235 = vcvt.s32.f32 %v227
        %vm236 = vcmp.le.s32.totalorder %v191, 126
        %vm237 = vcmp.le.s32.totalorder %v192, 126
        %vm238 = vcmp.le.s32.totalorder %v193, 126
        %vm239 = vcmp.le.s32.totalorder %v194, 126
        %vm240 = vcmp.le.s32.totalorder %v195, 126
        %vm241 = vcmp.le.s32.totalorder %v196, 126
        %vm242 = vcmp.le.s32.totalorder %v197, 126
        %vm243 = vcmp.le.s32.totalorder %v198, 126
        %v244 = vsel %vm236, 1, 0
        %v245 = vsel %vm237, 1, 0
        %v246 = vsel %vm238, 1, 0
        %v247 = vsel %vm239, 1, 0
        %v248 = vsel %vm240, 1, 0
        %v249 = vsel %vm241, 1, 0
        %v250 = vsel %vm242, 1, 0
        %v251 = vsel %vm243, 1, 0
        %v252 = vcvt.s32.f32 %v244
        %v253 = vcvt.s32.f32 %v245
        %v254 = vcvt.s32.f32 %v246
        %v255 = vcvt.s32.f32 %v247
        %v256 = vcvt.s32.f32 %v248
        %v257 = vcvt.s32.f32 %v249
        %v258 = vcvt.s32.f32 %v250
        %v259 = vcvt.s32.f32 %v251
        %vm260 = vcmp.ge.s32.totalorder %v202, 1
        %v261 = vsel %vm260, 1, 0
        %v262 = vcvt.s32.f32 %v261
        %vm263 = vcmp.le.s32.totalorder %v202, 126
        %v264 = vsel %vm263, 1, 0
        %v265 = vcvt.s32.f32 %v264
        %v266 = vadd.f32 %v228, %v252
        %v267 = vadd.f32 %v229, %v253
        %v268 = vadd.f32 %v230, %v254
        %v269 = vadd.f32 %v231, %v255
        %v270 = vadd.f32 %v232, %v256
        %v271 = vadd.f32 %v233, %v257
        %v272 = vadd.f32 %v234, %v258
        %v273 = vadd.f32 %v235, %v259
        %v274 = vadd.f32 %v262, %v265
        %v275 = vadd.f32 %v266, %v274
        %v276 = vadd.f32 %v267, %v274
        %v277 = vadd.f32 %v268, %v274
        %v278 = vadd.f32 %v269, %v274
        %v279 = vadd.f32 %v270, %v274
        %v280 = vadd.f32 %v271, %v274
        %v281 = vadd.f32 %v272, %v274
        %v282 = vadd.f32 %v273, %v274
        %v283 = vmul.f32 %v275, 0.5
        %v284 = vmul.f32 %v276, 0.5
        %v285 = vmul.f32 %v277, 0.5
        %v286 = vmul.f32 %v278, 0.5
        %v287 = vmul.f32 %v279, 0.5
        %v288 = vmul.f32 %v280, 0.5
        %v289 = vmul.f32 %v281, 0.5
        %v290 = vmul.f32 %v282, 0.5
        %v291 = vsub.f32 %v283, 3.0
        %v292 = vsub.f32 %v284, 3.0
        %v293 = vsub.f32 %v285, 3.0
        %v294 = vsub.f32 %v286, 3.0
        %v295 = vsub.f32 %v287, 3.0
        %v296 = vsub.f32 %v288, 3.0
        %v297 = vsub.f32 %v289, 3.0
        %v298 = vsub.f32 %v290, 3.0
        %s299 = sld [smem:[#allocation3 + %s30]]
        %s300 = sadd.s32 %s30, 1
        %s301 = sld [smem:[#allocation3 + %s300]]
        // While loop
        $region37: #{tpu_custom_call.1} parent=27 // loop_pre_header
          _
        $region38: #{tpu_custom_call.1} parent=27 // loop_header
          %s303 = sphi %s299, %s305
          %p304 = scmp.ge.s32.totalorder %s303, %s301
          %v308 = vphi 0.0, %v670
          %v309 = vphi 0.0, %v671
          %v310 = vphi 0.0, %v672
          %v311 = vphi 0.0, %v673
          %v312 = vphi 0.0, %v674
          %v313 = vphi 0.0, %v675
          %v314 = vphi 0.0, %v676
          %v315 = vphi 0.0, %v677
        $region39: #{tpu_custom_call.1} parent=27 // loop_header_branch
          %307 = sbr.rel (%p304) target = $region43
        $region40: #{tpu_custom_call.1} parent=27 // loop_body
          %s316 = sld [smem:[#allocation4 + %s303]]
          %s317 = smul.f32 %s316, 128.0
          %s318 = sld [smem:[#allocation7 + %s303]]
          %s319 = smul.f32 %s318, 128.0
          %v320 = vstv %s317
          %v321 = vsub.f32 %v320, %v203
          %v322 = vsub.f32 %v320, %v204
          %v323 = vsub.f32 %v320, %v205
          %v324 = vsub.f32 %v320, %v206
          %v325 = vsub.f32 %v320, %v207
          %v326 = vsub.f32 %v320, %v208
          %v327 = vsub.f32 %v320, %v209
          %v328 = vsub.f32 %v320, %v210
          %v329 = vadd.f32 %v321, 1.0
          %v330 = vadd.f32 %v322, 1.0
          %v331 = vadd.f32 %v323, 1.0
          %v332 = vadd.f32 %v324, 1.0
          %v333 = vadd.f32 %v325, 1.0
          %v334 = vadd.f32 %v326, 1.0
          %v335 = vadd.f32 %v327, 1.0
          %v336 = vadd.f32 %v328, 1.0
          %vm337 = vcmp.gt.f32.partialorder %v329, 0.0
          %vm338 = vcmp.gt.f32.partialorder %v330, 0.0
          %vm339 = vcmp.gt.f32.partialorder %v331, 0.0
          %vm340 = vcmp.gt.f32.partialorder %v332, 0.0
          %vm341 = vcmp.gt.f32.partialorder %v333, 0.0
          %vm342 = vcmp.gt.f32.partialorder %v334, 0.0
          %vm343 = vcmp.gt.f32.partialorder %v335, 0.0
          %vm344 = vcmp.gt.f32.partialorder %v336, 0.0
          %vm345 = vcmp.lt.f32.partialorder %v329, 0.0
          %vm346 = vcmp.lt.f32.partialorder %v330, 0.0
          %vm347 = vcmp.lt.f32.partialorder %v331, 0.0
          %vm348 = vcmp.lt.f32.partialorder %v332, 0.0
          %vm349 = vcmp.lt.f32.partialorder %v333, 0.0
          %vm350 = vcmp.lt.f32.partialorder %v334, 0.0
          %vm351 = vcmp.lt.f32.partialorder %v335, 0.0
          %vm352 = vcmp.lt.f32.partialorder %v336, 0.0
          %v353 = vsel %vm345, -1.0, 0.0
          %v354 = vsel %vm346, -1.0, 0.0
          %v355 = vsel %vm347, -1.0, 0.0
          %v356 = vsel %vm348, -1.0, 0.0
          %v357 = vsel %vm349, -1.0, 0.0
          %v358 = vsel %vm350, -1.0, 0.0
          %v359 = vsel %vm351, -1.0, 0.0
          %v360 = vsel %vm352, -1.0, 0.0
          %v361 = vsel %vm337, 1.0, %v353
          %v362 = vsel %vm338, 1.0, %v354
          %v363 = vsel %vm339, 1.0, %v355
          %v364 = vsel %vm340, 1.0, %v356
          %v365 = vsel %vm341, 1.0, %v357
          %v366 = vsel %vm342, 1.0, %v358
          %v367 = vsel %vm343, 1.0, %v359
          %v368 = vsel %vm344, 1.0, %v360
          %vm369 = vcmp.gt.f32.partialorder %v321, 0.0
          %vm370 = vcmp.gt.f32.partialorder %v322, 0.0
          %vm371 = vcmp.gt.f32.partialorder %v323, 0.0
          %vm372 = vcmp.gt.f32.partialorder %v324, 0.0
          %vm373 = vcmp.gt.f32.partialorder %v325, 0.0
          %vm374 = vcmp.gt.f32.partialorder %v326, 0.0
          %vm375 = vcmp.gt.f32.partialorder %v327, 0.0
          %vm376 = vcmp.gt.f32.partialorder %v328, 0.0
          %vm377 = vcmp.lt.f32.partialorder %v321, 0.0
          %vm378 = vcmp.lt.f32.partialorder %v322, 0.0
          %vm379 = vcmp.lt.f32.partialorder %v323, 0.0
          %vm380 = vcmp.lt.f32.partialorder %v324, 0.0
          %vm381 = vcmp.lt.f32.partialorder %v325, 0.0
          %vm382 = vcmp.lt.f32.partialorder %v326, 0.0
          %vm383 = vcmp.lt.f32.partialorder %v327, 0.0
          %vm384 = vcmp.lt.f32.partialorder %v328, 0.0
          %v385 = vsel %vm377, -1.0, 0.0
          %v386 = vsel %vm378, -1.0, 0.0
          %v387 = vsel %vm379, -1.0, 0.0
          %v388 = vsel %vm380, -1.0, 0.0
          %v389 = vsel %vm381, -1.0, 0.0
          %v390 = vsel %vm382, -1.0, 0.0
          %v391 = vsel %vm383, -1.0, 0.0
          %v392 = vsel %vm384, -1.0, 0.0
          %v393 = vsel %vm369, 1.0, %v385
          %v394 = vsel %vm370, 1.0, %v386
          %v395 = vsel %vm371, 1.0, %v387
          %v396 = vsel %vm372, 1.0, %v388
          %v397 = vsel %vm373, 1.0, %v389
          %v398 = vsel %vm374, 1.0, %v390
          %v399 = vsel %vm375, 1.0, %v391
          %v400 = vsel %vm376, 1.0, %v392
          %v401 = vsub.f32 %v321, 1.0
          %v402 = vsub.f32 %v322, 1.0
          %v403 = vsub.f32 %v323, 1.0
          %v404 = vsub.f32 %v324, 1.0
          %v405 = vsub.f32 %v325, 1.0
          %v406 = vsub.f32 %v326, 1.0
          %v407 = vsub.f32 %v327, 1.0
          %v408 = vsub.f32 %v328, 1.0
          %vm409 = vcmp.gt.f32.partialorder %v401, 0.0
          %vm410 = vcmp.gt.f32.partialorder %v402, 0.0
          %vm411 = vcmp.gt.f32.partialorder %v403, 0.0
          %vm412 = vcmp.gt.f32.partialorder %v404, 0.0
          %vm413 = vcmp.gt.f32.partialorder %v405, 0.0
          %vm414 = vcmp.gt.f32.partialorder %v406, 0.0
          %vm415 = vcmp.gt.f32.partialorder %v407, 0.0
          %vm416 = vcmp.gt.f32.partialorder %v408, 0.0
          %vm417 = vcmp.lt.f32.partialorder %v401, 0.0
          %vm418 = vcmp.lt.f32.partialorder %v402, 0.0
          %vm419 = vcmp.lt.f32.partialorder %v403, 0.0
          %vm420 = vcmp.lt.f32.partialorder %v404, 0.0
          %vm421 = vcmp.lt.f32.partialorder %v405, 0.0
          %vm422 = vcmp.lt.f32.partialorder %v406, 0.0
          %vm423 = vcmp.lt.f32.partialorder %v407, 0.0
          %vm424 = vcmp.lt.f32.partialorder %v408, 0.0
          %v425 = vsel %vm417, -1.0, 0.0
          %v426 = vsel %vm418, -1.0, 0.0
          %v427 = vsel %vm419, -1.0, 0.0
          %v428 = vsel %vm420, -1.0, 0.0
          %v429 = vsel %vm421, -1.0, 0.0
          %v430 = vsel %vm422, -1.0, 0.0
          %v431 = vsel %vm423, -1.0, 0.0
          %v432 = vsel %vm424, -1.0, 0.0
          %v433 = vsel %vm409, 1.0, %v425
          %v434 = vsel %vm410, 1.0, %v426
          %v435 = vsel %vm411, 1.0, %v427
          %v436 = vsel %vm412, 1.0, %v428
          %v437 = vsel %vm413, 1.0, %v429
          %v438 = vsel %vm414, 1.0, %v430
          %v439 = vsel %vm415, 1.0, %v431
          %v440 = vsel %vm416, 1.0, %v432
          %v441 = vsub.f32 %v321, 2.0
          %v442 = vsub.f32 %v322, 2.0
          %v443 = vsub.f32 %v323, 2.0
          %v444 = vsub.f32 %v324, 2.0
          %v445 = vsub.f32 %v325, 2.0
          %v446 = vsub.f32 %v326, 2.0
          %v447 = vsub.f32 %v327, 2.0
          %v448 = vsub.f32 %v328, 2.0
          %vm449 = vcmp.gt.f32.partialorder %v441, 0.0
          %vm450 = vcmp.gt.f32.partialorder %v442, 0.0
          %vm451 = vcmp.gt.f32.partialorder %v443, 0.0
          %vm452 = vcmp.gt.f32.partialorder %v444, 0.0
          %vm453 = vcmp.gt.f32.partialorder %v445, 0.0
          %vm454 = vcmp.gt.f32.partialorder %v446, 0.0
          %vm455 = vcmp.gt.f32.partialorder %v447, 0.0
          %vm456 = vcmp.gt.f32.partialorder %v448, 0.0
          %vm457 = vcmp.lt.f32.partialorder %v441, 0.0
          %vm458 = vcmp.lt.f32.partialorder %v442, 0.0
          %vm459 = vcmp.lt.f32.partialorder %v443, 0.0
          %vm460 = vcmp.lt.f32.partialorder %v444, 0.0
          %vm461 = vcmp.lt.f32.partialorder %v445, 0.0
          %vm462 = vcmp.lt.f32.partialorder %v446, 0.0
          %vm463 = vcmp.lt.f32.partialorder %v447, 0.0
          %vm464 = vcmp.lt.f32.partialorder %v448, 0.0
          %v465 = vsel %vm457, -1.0, 0.0
          %v466 = vsel %vm458, -1.0, 0.0
          %v467 = vsel %vm459, -1.0, 0.0
          %v468 = vsel %vm460, -1.0, 0.0
          %v469 = vsel %vm461, -1.0, 0.0
          %v470 = vsel %vm462, -1.0, 0.0
          %v471 = vsel %vm463, -1.0, 0.0
          %v472 = vsel %vm464, -1.0, 0.0
          %v473 = vsel %vm449, 1.0, %v465
          %v474 = vsel %vm450, 1.0, %v466
          %v475 = vsel %vm451, 1.0, %v467
          %v476 = vsel %vm452, 1.0, %v468
          %v477 = vsel %vm453, 1.0, %v469
          %v478 = vsel %vm454, 1.0, %v470
          %v479 = vsel %vm455, 1.0, %v471
          %v480 = vsel %vm456, 1.0, %v472
          %v481 = vmul.f32 %v393, %v433
          %v482 = vmul.f32 %v394, %v434
          %v483 = vmul.f32 %v395, %v435
          %v484 = vmul.f32 %v396, %v436
          %v485 = vmul.f32 %v397, %v437
          %v486 = vmul.f32 %v398, %v438
          %v487 = vmul.f32 %v399, %v439
          %v488 = vmul.f32 %v400, %v440
          %v489 = vmul.f32 %v361, %v393
          %v490 = vmul.f32 %v362, %v394
          %v491 = vmul.f32 %v363, %v395
          %v492 = vmul.f32 %v364, %v396
          %v493 = vmul.f32 %v365, %v397
          %v494 = vmul.f32 %v366, %v398
          %v495 = vmul.f32 %v367, %v399
          %v496 = vmul.f32 %v368, %v400
          %v497 = vmul.f32 %v228, %v489
          %v498 = vmul.f32 %v229, %v490
          %v499 = vmul.f32 %v230, %v491
          %v500 = vmul.f32 %v231, %v492
          %v501 = vmul.f32 %v232, %v493
          %v502 = vmul.f32 %v233, %v494
          %v503 = vmul.f32 %v234, %v495
          %v504 = vmul.f32 %v235, %v496
          %v505 = vmul.f32 %v433, %v473
          %v506 = vmul.f32 %v434, %v474
          %v507 = vmul.f32 %v435, %v475
          %v508 = vmul.f32 %v436, %v476
          %v509 = vmul.f32 %v437, %v477
          %v510 = vmul.f32 %v438, %v478
          %v511 = vmul.f32 %v439, %v479
          %v512 = vmul.f32 %v440, %v480
          %v513 = vmul.f32 %v252, %v505
          %v514 = vmul.f32 %v253, %v506
          %v515 = vmul.f32 %v254, %v507
          %v516 = vmul.f32 %v255, %v508
          %v517 = vmul.f32 %v256, %v509
          %v518 = vmul.f32 %v257, %v510
          %v519 = vmul.f32 %v258, %v511
          %v520 = vmul.f32 %v259, %v512
          %v521 = vadd.f32 %v497, %v513
          %v522 = vadd.f32 %v498, %v514
          %v523 = vadd.f32 %v499, %v515
          %v524 = vadd.f32 %v500, %v516
          %v525 = vadd.f32 %v501, %v517
          %v526 = vadd.f32 %v502, %v518
          %v527 = vadd.f32 %v503, %v519
          %v528 = vadd.f32 %v504, %v520
          %v529 = vmul.f32 %v521, 0.5
          %v530 = vmul.f32 %v522, 0.5
          %v531 = vmul.f32 %v523, 0.5
          %v532 = vmul.f32 %v524, 0.5
          %v533 = vmul.f32 %v525, 0.5
          %v534 = vmul.f32 %v526, 0.5
          %v535 = vmul.f32 %v527, 0.5
          %v536 = vmul.f32 %v528, 0.5
          %v537 = vstv %s319
          %v538 = vsub.f32 %v537, %v211
          %v539 = vadd.f32 %v538, 1.0
          %vm540 = vcmp.gt.f32.partialorder %v539, 0.0
          %vm541 = vcmp.lt.f32.partialorder %v539, 0.0
          %v542 = vsel %vm541, -1.0, 0.0
          %v543 = vsel %vm540, 1.0, %v542
          %vm544 = vcmp.gt.f32.partialorder %v538, 0.0
          %vm545 = vcmp.lt.f32.partialorder %v538, 0.0
          %v546 = vsel %vm545, -1.0, 0.0
          %v547 = vsel %vm544, 1.0, %v546
          %v548 = vsub.f32 %v538, 1.0
          %vm549 = vcmp.gt.f32.partialorder %v548, 0.0
          %vm550 = vcmp.lt.f32.partialorder %v548, 0.0
          %v551 = vsel %vm550, -1.0, 0.0
          %v552 = vsel %vm549, 1.0, %v551
          %v553 = vsub.f32 %v538, 2.0
          %vm554 = vcmp.gt.f32.partialorder %v553, 0.0
          %vm555 = vcmp.lt.f32.partialorder %v553, 0.0
          %v556 = vsel %vm555, -1.0, 0.0
          %v557 = vsel %vm554, 1.0, %v556
          %v558 = vmul.f32 %v547, %v552
          %v559 = vmul.f32 %v543, %v547
          %v560 = vmul.f32 %v262, %v559
          %v561 = vmul.f32 %v552, %v557
          %v562 = vmul.f32 %v265, %v561
          %v563 = vadd.f32 %v560, %v562
          %v564 = vmul.f32 %v563, 0.5
          %vm565 = vcmask 7168
          %v566 = vsel %vm565, %v529, %v481
          %v567 = vsel %vm565, %v530, %v482
          %v568 = vsel %vm565, %v531, %v483
          %v569 = vsel %vm565, %v532, %v484
          %v570 = vsel %vm565, %v533, %v485
          %v571 = vsel %vm565, %v534, %v486
          %v572 = vsel %vm565, %v535, %v487
          %v573 = vsel %vm565, %v536, %v488
          %v574 = vpack.c.bf16 %v567, %v566
          %v575 = vpack.c.bf16 %v569, %v568
          %v576 = vpack.c.bf16 %v571, %v570
          %v577 = vpack.c.bf16 %v573, %v572
          %vm578 = vcmask 1040384
          %v579 = vsel %vm578, %v558, %v564
          %v580 = vpack.c.bf16 %v579, %v579
          %vm581 = vcmask 15360
          %v583 = vsel %vm581, %v574, 0
          %v586 = vsel %vm581, %v575, 0
          %v589 = vsel %vm581, %v576, 0
          %v592 = vsel %vm581, %v577, 0
          %v595 = vsel %vm578, %v580, 0
          %597 = vmatprep.subr.bf16.mxu0 0
          %598 = vmatpush1.bf16.msra.mxu0 0
          %599 = vmatprep.subr.bf16.mxu0 0
          %600 = vmatpush1.bf16.msra.mxu0 0
          %601 = vmatprep.subr.bf16.mxu0 0
          %602 = vmatpush1.bf16.msra.mxu0 0
          %603 = vmatprep.subr.bf16.mxu0 0
          %604 = vmatpush1.bf16.msra.mxu0 0
          %605 = vmatprep.subr.bf16.mxu0 0
          %606 = vmatpush1.bf16.msra.mxu0 0
          %607 = vmatprep.subr.bf16.mxu0 0
          %608 = vmatpush1.bf16.msra.mxu0 0
          %609 = vmatprep.subr.bf16.mxu0 0
          %610 = vmatpush1.bf16.msra.mxu0 0
          %611 = vmatprep.subr.bf16.mxu0 0
          %612 = vmatpush1.bf16.msra.mxu0 %v595
          %613 = vmatprep.subr.bf16.mxu0 0
          %614 = vmatpush2.bf16.msra.mxu0 0
          %615 = vmatprep.subr.bf16.mxu0 0
          %616 = vmatpush2.bf16.msra.mxu0 0
          %617 = vmatprep.subr.bf16.mxu0 0
          %618 = vmatpush2.bf16.msra.mxu0 0
          %619 = vmatprep.subr.bf16.mxu0 0
          %620 = vmatpush2.bf16.msra.mxu0 0
          %621 = vmatprep.subr.bf16.mxu0 0
          %622 = vmatpush2.bf16.msra.mxu0 0
          %623 = vmatprep.subr.bf16.mxu0 0
          %624 = vmatpush2.bf16.msra.mxu0 0
          %625 = vmatprep.subr.bf16.mxu0 0
          %626 = vmatpush2.bf16.msra.mxu0 0
          %627 = vmatprep.subr.bf16.mxu0 0
          %628 = vmatpush2.bf16.msra.mxu0 0
          %629 = vmatprep.mubr.bf16.mxu0 0
          %630 = vmatmul.mubr.bf16.gmra.mxu0 %v583
          %v631 = vpop.f32.mrf.mxu0
          %v632 = vadd.f32 0.0, %v631
          %v633 = vpop.f32.mrf.mxu0
          %v634 = vpop.f32.mrf.mxu0
          %v635 = vadd.f32 0.0, %v634
          %v636 = vpop.f32.mrf.mxu0
          %637 = vmatprep.mubr.bf16.mxu0 0
          %638 = vmatmul.mubr.bf16.gmra.mxu0 %v586
          %v639 = vpop.f32.mrf.mxu0
          %v640 = vadd.f32 0.0, %v639
          %v641 = vpop.f32.mrf.mxu0
          %v642 = vpop.f32.mrf.mxu0
          %v643 = vadd.f32 0.0, %v642
          %v644 = vpop.f32.mrf.mxu0
          %645 = vmatprep.mubr.bf16.mxu0 0
          %646 = vmatmul.mubr.bf16.gmra.mxu0 %v589
          %v647 = vpop.f32.mrf.mxu0
          %v648 = vadd.f32 0.0, %v647
          %v649 = vpop.f32.mrf.mxu0
          %v650 = vpop.f32.mrf.mxu0
          %v651 = vadd.f32 0.0, %v650
          %v652 = vpop.f32.mrf.mxu0
          %653 = vmatprep.mubr.bf16.mxu0 0
          %654 = vmatmul.mubr.bf16.gmra.mxu0 %v592
          %v655 = vpop.f32.mrf.mxu0
          %v656 = vadd.f32 0.0, %v655
          %v657 = vpop.f32.mrf.mxu0
          %v658 = vpop.f32.mrf.mxu0
          %v659 = vadd.f32 0.0, %v658
          %v660 = vpop.f32.mrf.mxu0
          %661 = vdwg.mxu0
          %v662 = vsub.f32 %v291, %v632
          %v663 = vsub.f32 %v292, %v635
          %v664 = vsub.f32 %v293, %v640
          %v665 = vsub.f32 %v294, %v643
          %v666 = vsub.f32 %v295, %v648
          %v667 = vsub.f32 %v296, %v651
          %v668 = vsub.f32 %v297, %v656
          %v669 = vsub.f32 %v298, %v659
          %v670 = vmax.f32 %v308, %v662
          %v671 = vmax.f32 %v309, %v663
          %v672 = vmax.f32 %v310, %v664
          %v673 = vmax.f32 %v311, %v665
          %v674 = vmax.f32 %v312, %v666
          %v675 = vmax.f32 %v313, %v667
          %v676 = vmax.f32 %v314, %v668
          %v677 = vmax.f32 %v315, %v669
        $region41: #{tpu_custom_call.1} parent=27 // loop_footer
          %s305 = sadd.s32 %s303, 1
        $region42: #{tpu_custom_call.1} parent=27 // loop_footer_branch
          %302 = sbr.rel target = $region38
        $region43: #{tpu_custom_call.1} parent=27 // loop_exit
          _
        %678 = vst [vmem:[%s176] sm:$0xff] %v308
        %679 = vst [vmem:[%s176 + $0x8] sm:$0xff] %v309
        %680 = vst [vmem:[%s176 + $0x10] sm:$0xff] %v310
        %681 = vst [vmem:[%s176 + $0x18] sm:$0xff] %v311
        %682 = vst [vmem:[%s176 + $0x20] sm:$0xff] %v312
        %683 = vst [vmem:[%s176 + $0x28] sm:$0xff] %v313
        %684 = vst [vmem:[%s176 + $0x30] sm:$0xff] %v314
        %685 = vst [vmem:[%s176 + $0x38] sm:$0xff] %v315
        %s686 = sand.u32 %s96, 1
        %s687 = scalar_lea.sflag [#allocation5], %s686
        %s688 = sand.u32 %s96, 1
        %s689 = smul.addr %s688, 64
        %s690 = scalar_lea.vmem [#allocation9], %s689
        // Predicated region
        $region44: #{tpu_custom_call.1} parent=27 // pred_check
          %p691 = pneg %p106
        $region45: #{tpu_custom_call.1} parent=27 // pred_check_branch
          %693 = sbr.rel (%p691) target = $region47
        $region46: #{tpu_custom_call.1} parent=27 // pred_region
          %s694 = smul.u32 8, %s28
          %s696 = ssub.s32 1024, 1024
          %697 = vsyncadd %s687, %s696
          %s698 = sadd.s32 %s29, %s694
          %s699 = smul.addr %s30, 16
          %s700 = sadd.s32 %s698, %s699
          %s701 = smul.addr %s700, 128
          %s702 = scalar_lea.hbm %s3, %s701
          %s703 = sshll.u32 %s690, 4
          %s704 = int_to_ptr.vmem [resolvable:$true] %s703
          %709 = dma.vmem_to_hbm [thread:$0]  %s704, 1024, %s702, %s687, 128, 128, 8
        $region47: #{tpu_custom_call.1} parent=27 // pred_fallthru
          _
      $region28: #{tpu_custom_call.1} parent=5 // pred_fallthru
        _
      %p710 = scmp.le.s32.totalorder 2, %s18
      // Predicated region
      $region48: #{tpu_custom_call.1} parent=5 // pred_check
        %p711 = pneg %p710
      $region49: #{tpu_custom_call.1} parent=5 // pred_check_branch
        %713 = sbr.rel (%p711) target = $region51
      $region50: #{tpu_custom_call.1} parent=5 // pred_region
        %s714 = ssub.s32 %s18, 2
        // Predicated region
        $region52: #{tpu_custom_call.1} parent=50 // pred_check
          %p715 = pneg %p112
        $region53: #{tpu_custom_call.1} parent=50 // pred_check_branch
          %717 = sbr.rel (%p715) target = $region55
        $region54: #{tpu_custom_call.1} parent=50 // pred_region
          %s718 = sand.u32 %s97, 1
          %s719 = scalar_lea.sflag [#allocation5], %s718
          %s720 = sand.u32 %s97, 1
          %s721 = smul.addr %s720, 64
          %s722 = scalar_lea.vmem [#allocation9], %s721
          %723 = dma.done %s719, 1024
        $region55: #{tpu_custom_call.1} parent=50 // pred_fallthru
          _
      $region51: #{tpu_custom_call.1} parent=5 // pred_fallthru
        _
    $region6: #{tpu_custom_call.1} parent=1 // loop_footer
      %s22 = sadd.s32 1, %s18
    $region7: #{tpu_custom_call.1} parent=1 // loop_footer_branch
      %17 = sbr.rel target = $region3
    $region8: #{tpu_custom_call.1} parent=1 // loop_exit
      _
    %724 = vsyncpa [#allocation5], 1
    %s725 = scalar_lea.sflag [#allocation5], 1
    %726 = vsyncpa %s725, 1
    %727 = vsyncpa [#allocation6], 1
    %s728 = scalar_lea.sflag [#allocation6], 1
    %729 = vsyncpa %s728, 1
    %730 = vsyncpa [#allocation8], 1

</llo_original>
